<compile_context>
chip_gen: v6e
topology: v6e:2x2x1
jax: 0.10.0
libtpu: 0.0.40
codegen_flags: <defaults>
</compile_context>

<pallas_src>
import functools

import jax
import jax.numpy as jnp
from jax.experimental import pallas as pl
from jax.experimental.pallas import tpu as pltpu

_IN = 180    # flattened input features
_H1 = 72     # hidden 1 (logical)
_H2 = 16     # hidden 2 (logical)
_OUT = 2     # logits
_LANE = 128  # hidden dims padded to TPU lane width


def _polymod_kernel(x_ref, w1_ref, b1_ref, w2_ref, b2_ref, w3_ref, b3_ref, o_ref):
    # x_ref: (TB, 180) f32 batch tile; cast to bf16 in-kernel (no extra HBM pass).
    x = x_ref[...].astype(jnp.bfloat16)

    # Layer 1: (TB,180) @ (180,128) -> f32 MXU acc, bf16 epilogue (bias + ReLU).
    h1 = jnp.dot(x, w1_ref[...], preferred_element_type=jnp.float32).astype(jnp.bfloat16)
    h1 = jnp.maximum(h1 + b1_ref[...], 0)                    # (TB, 128) bf16, lane-dense

    # Layer 2: (TB,128) @ (128,128)
    h2 = jnp.dot(h1, w2_ref[...], preferred_element_type=jnp.float32).astype(jnp.bfloat16)
    h2 = jnp.maximum(h2 + b2_ref[...], 0)                    # (TB, 128) bf16, lane-dense

    # Layer 3: (TB,128) @ (128,2); tiny masked store is acceptable (measure-first item).
    logits = jnp.dot(h2, w3_ref[...], preferred_element_type=jnp.float32) + b3_ref[...]
    o_ref[...] = logits.astype(o_ref.dtype)


def _round_up(n, m):
    return ((n + m - 1) // m) * m


def _pack_params(params):
    """Cast weights/biases to bf16 and zero-pad hidden feature dims to lane width 128."""
    w1, b1, w2, b2, w3, b3 = params
    w1p = jnp.zeros((_IN, _LANE), jnp.bfloat16).at[:, :_H1].set(w1.astype(jnp.bfloat16))
    b1p = jnp.zeros((1, _LANE), jnp.bfloat16).at[:, :_H1].set(b1.astype(jnp.bfloat16))
    w2p = jnp.zeros((_LANE, _LANE), jnp.bfloat16).at[:_H1, :_H2].set(w2.astype(jnp.bfloat16))
    b2p = jnp.zeros((1, _LANE), jnp.bfloat16).at[:, :_H2].set(b2.astype(jnp.bfloat16))
    w3p = jnp.zeros((_LANE, _OUT), jnp.bfloat16).at[:_H2, :].set(w3.astype(jnp.bfloat16))
    b3p = b3.astype(jnp.float32)                               # final bias stays f32
    return w1p, b1p, w2p, b2p, w3p, b3p


@functools.partial(jax.jit, static_argnames=("tile_b",))
def polymod_forward(x_nchw, params, *, tile_b=4096):
    """x_nchw: (B, C, H, W) with C*H*W == 180. Returns (B, 2) f32 logits."""
    assert tile_b % 8 == 0, "tile_b must be a multiple of the sublane count (8)"
    B = x_nchw.shape[0]
    x_flat = x_nchw.reshape(B, -1)                 # free reshape; stays f32 (no bf16 copy)
    assert x_flat.shape[1] == _IN, f"expected {_IN} features, got {x_flat.shape[1]}"

    # Pad batch only to the sublane multiple (8), and only when needed.  The
    # tile-level raggedness (B not a multiple of tb) is handled by the cdiv grid:
    # reads past B are padded, writes past B are dropped, and no cross-row
    # reduction happens in the kernel, so results for rows < B are exact.
    b_in = _round_up(B, 8)
    x_in = x_flat if b_in == B else jnp.pad(x_flat, ((0, b_in - B), (0, 0)))

    tb = min(tile_b, b_in)
    grid = (pl.cdiv(b_in, tb),)

    w1p, b1p, w2p, b2p, w3p, b3p = _pack_params(params)

    def const_spec(a):
        # Whole-array block, same block every grid step -> stays resident in VMEM.
        return pl.BlockSpec(a.shape, lambda i: (0,) * a.ndim)

    flops = 2 * b_in * (_IN * _LANE + _LANE * _LANE + _LANE * _OUT)
    bytes_accessed = (
        b_in * _IN * 4             # x read as f32 (cast to bf16 in-kernel)
        + b_in * _OUT * 4          # logits (f32)
        + (w1p.size + w2p.size + w3p.size) * 2
        + (b1p.size + b2p.size) * 2
        + b3p.size * 4
    )
    cost = pl.CostEstimate(flops=flops, transcendentals=0,
                           bytes_accessed=bytes_accessed)

    out = pl.pallas_call(
        _polymod_kernel,
        out_shape=jax.ShapeDtypeStruct((b_in, _OUT), jnp.float32),
        grid=grid,
        in_specs=[
            pl.BlockSpec((tb, _IN), lambda i: (i, 0)),   # batch-tiled f32 input
            const_spec(w1p), const_spec(b1p),
            const_spec(w2p), const_spec(b2p),
            const_spec(w3p), const_spec(b3p),
        ],
        out_specs=pl.BlockSpec((tb, _OUT), lambda i: (i, 0)),
        compiler_params=pltpu.CompilerParams(
            dimension_semantics=("parallel",),           # megacore sharding on v7x
            vmem_limit_bytes=48 * 1024 * 1024,           # headroom for large tiles
        ),
        cost_estimate=cost,
    )(x_in, w1p, b1p, w2p, b2p, w3p, b3p)

    return out[:B]


def init_params(key):
    """Deterministic init mimicking nn.Linear default U(-1/sqrt(fan_in), 1/sqrt(fan_in)).
    Weights stored transposed: (in_features, out_features); biases (1, out_features)."""
    dims = [(_IN, _H1), (_H1, _H2), (_H2, _OUT)]
    params = []
    for i, (fan_in, fan_out) in enumerate(dims):
        kw, kb = jax.random.split(jax.random.fold_in(key, i))
        bound = 1.0 / jnp.sqrt(float(fan_in))
        w = jax.random.uniform(kw, (fan_in, fan_out), jnp.float32, -bound, bound)
        b = jax.random.uniform(kb, (1, fan_out), jnp.float32, -bound, bound)
        params += [w, b]
    return tuple(params)


def reference_forward(x_nchw, params):
    """Pure-JAX reference mirroring the kernel's bf16 quantization points."""
    w1, b1, w2, b2, w3, b3 = params
    x = x_nchw.reshape(x_nchw.shape[0], -1).astype(jnp.bfloat16)
    h1 = jnp.dot(x, w1.astype(jnp.bfloat16),
                 preferred_element_type=jnp.float32).astype(jnp.bfloat16)
    h1 = jnp.maximum(h1 + b1.astype(jnp.bfloat16), 0)
    h2 = jnp.dot(h1, w2.astype(jnp.bfloat16),
                 preferred_element_type=jnp.float32).astype(jnp.bfloat16)
    h2 = jnp.maximum(h2 + b2.astype(jnp.bfloat16), 0)
    return jnp.dot(h2, w3.astype(jnp.bfloat16),
                   preferred_element_type=jnp.float32) + b3


if __name__ == "__main__":
    key = jax.random.PRNGKey(0)
    kx, kp = jax.random.split(key)

    # Small NCHW input that flattens to 180 features: (B=2, C=5, H=6, W=6)
    x = jax.random.normal(kx, (2, 5, 6, 6), jnp.float32)
    params = init_params(kp)

    logits = polymod_forward(x, params)
    jax.block_until_ready(logits)

    ref = reference_forward(x, params)
    assert logits.shape == (2, 2), logits.shape
    assert jnp.allclose(logits, ref, atol=2e-2, rtol=2e-2), "mismatch vs reference"

    print("KERNEL_OK")
</pallas_src>

<mosaic_0001>
module attributes {stable_mosaic.version = 11 : i64} {
  func.func @_polymod_kernel(%arg0: i32, %arg1: memref<8x180xf32, #tpu.memory_space<vmem>>, %arg2: memref<180x128xbf16, #tpu.memory_space<vmem>>, %arg3: memref<1x128xbf16, #tpu.memory_space<vmem>>, %arg4: memref<128x128xbf16, #tpu.memory_space<vmem>>, %arg5: memref<1x128xbf16, #tpu.memory_space<vmem>>, %arg6: memref<128x2xbf16, #tpu.memory_space<vmem>>, %arg7: memref<1x2xf32, #tpu.memory_space<vmem>>, %arg8: memref<8x2xf32, #tpu.memory_space<vmem>>) attributes {dimension_semantics = [#tpu.dimension_semantics<parallel>], iteration_bounds = array<i64: 1>, scalar_prefetch = 0 : i64, scratch_operands = 0 : i64, tpu.core_type = #tpu.core_type<tc>, window_params = [{transform_indices = @transform_0, window_bounds = array<i64: 8, 180>}, {pipeline_mode = #tpu.pipeline_mode<synchronous>, transform_indices = @transform_1, window_bounds = array<i64: 180, 128>}, {pipeline_mode = #tpu.pipeline_mode<synchronous>, transform_indices = @transform_2, window_bounds = array<i64: 1, 128>}, {pipeline_mode = #tpu.pipeline_mode<synchronous>, transform_indices = @transform_3, window_bounds = array<i64: 128, 128>}, {pipeline_mode = #tpu.pipeline_mode<synchronous>, transform_indices = @transform_4, window_bounds = array<i64: 1, 128>}, {pipeline_mode = #tpu.pipeline_mode<synchronous>, transform_indices = @transform_5, window_bounds = array<i64: 128, 2>}, {pipeline_mode = #tpu.pipeline_mode<synchronous>, transform_indices = @transform_6, window_bounds = array<i64: 1, 2>}, {transform_indices = @transform_7, window_bounds = array<i64: 8, 2>}]} {
    %c0 = arith.constant 0 : index
    %c0_0 = arith.constant 0 : index
    %0 = vector.load %arg1[%c0, %c0_0] : memref<8x180xf32, #tpu.memory_space<vmem>>, vector<8x180xf32>
    %1 = arith.truncf %0 : vector<8x180xf32> to vector<8x180xbf16>
    %c0_1 = arith.constant 0 : index
    %c0_2 = arith.constant 0 : index
    %2 = vector.load %arg2[%c0_1, %c0_2] : memref<180x128xbf16, #tpu.memory_space<vmem>>, vector<180x128xbf16>
    %cst = arith.constant dense<0.000000e+00> : vector<8x128xf32>
    %3 = tpu.matmul %1, %2, %cst {dimension_numbers = #tpu.dot_dimension_numbers<[1], [0], [0], [1], [0, 0, 1, 1], [], []>} : vector<8x180xbf16>, vector<180x128xbf16>, vector<8x128xf32> -> vector<8x128xf32>
    %4 = arith.truncf %3 : vector<8x128xf32> to vector<8x128xbf16>
    %c0_3 = arith.constant 0 : index
    %c0_4 = arith.constant 0 : index
    %5 = vector.load %arg3[%c0_3, %c0_4] : memref<1x128xbf16, #tpu.memory_space<vmem>>, vector<1x128xbf16>
    %6 = vector.broadcast %5 : vector<1x128xbf16> to vector<8x128xbf16>
    %7 = arith.addf %4, %6 : vector<8x128xbf16>
    %cst_5 = arith.constant 0.000000e+00 : bf16
    %8 = vector.broadcast %cst_5 : bf16 to vector<8x128xbf16>
    %9 = arith.maximumf %7, %8 : vector<8x128xbf16>
    %c0_6 = arith.constant 0 : index
    %c0_7 = arith.constant 0 : index
    %10 = vector.load %arg4[%c0_6, %c0_7] : memref<128x128xbf16, #tpu.memory_space<vmem>>, vector<128x128xbf16>
    %cst_8 = arith.constant dense<0.000000e+00> : vector<8x128xf32>
    %11 = tpu.matmul %9, %10, %cst_8 {dimension_numbers = #tpu.dot_dimension_numbers<[1], [0], [0], [1], [0, 0, 1, 1], [], []>} : vector<8x128xbf16>, vector<128x128xbf16>, vector<8x128xf32> -> vector<8x128xf32>
    %12 = arith.truncf %11 : vector<8x128xf32> to vector<8x128xbf16>
    %c0_9 = arith.constant 0 : index
    %c0_10 = arith.constant 0 : index
    %13 = vector.load %arg5[%c0_9, %c0_10] : memref<1x128xbf16, #tpu.memory_space<vmem>>, vector<1x128xbf16>
    %14 = vector.broadcast %13 : vector<1x128xbf16> to vector<8x128xbf16>
    %15 = arith.addf %12, %14 : vector<8x128xbf16>
    %cst_11 = arith.constant 0.000000e+00 : bf16
    %16 = vector.broadcast %cst_11 : bf16 to vector<8x128xbf16>
    %17 = arith.maximumf %15, %16 : vector<8x128xbf16>
    %c0_12 = arith.constant 0 : index
    %c0_13 = arith.constant 0 : index
    %18 = vector.load %arg6[%c0_12, %c0_13] : memref<128x2xbf16, #tpu.memory_space<vmem>>, vector<128x2xbf16>
    %cst_14 = arith.constant dense<0.000000e+00> : vector<8x2xf32>
    %19 = tpu.matmul %17, %18, %cst_14 {dimension_numbers = #tpu.dot_dimension_numbers<[1], [0], [0], [1], [0, 0, 1, 1], [], []>} : vector<8x128xbf16>, vector<128x2xbf16>, vector<8x2xf32> -> vector<8x2xf32>
    %c0_15 = arith.constant 0 : index
    %c0_16 = arith.constant 0 : index
    %20 = vector.load %arg7[%c0_15, %c0_16] : memref<1x2xf32, #tpu.memory_space<vmem>>, vector<1x2xf32>
    %21 = vector.broadcast %20 : vector<1x2xf32> to vector<8x2xf32>
    %22 = arith.addf %19, %21 : vector<8x2xf32>
    %c0_17 = arith.constant 0 : index
    %c0_18 = arith.constant 0 : index
    %23 = vector.load %arg8[%c0_17, %c0_18] : memref<8x2xf32, #tpu.memory_space<vmem>>, vector<8x2xf32>
    tpu.vector_store %arg8[%c0_17, %c0_18], %22 {strides = array<i32>} : memref<8x2xf32, #tpu.memory_space<vmem>>, vector<8x2xf32>,
    return
  }
  func.func @transform_0(%arg0: i32) -> (i32, i32) {
    %c0_i32 = arith.constant 0 : i32
    %c0_i32_0 = arith.constant 0 : i32
    return %arg0, %c0_i32 : i32, i32
  }
  func.func @transform_1(%arg0: i32) -> (i32, i32) {
    %c0_i32 = arith.constant 0 : i32
    %c0_i32_0 = arith.constant 0 : i32
    %c0_i32_1 = arith.constant 0 : i32
    return %c0_i32, %c0_i32_0 : i32, i32
  }
  func.func @transform_2(%arg0: i32) -> (i32, i32) {
    %c0_i32 = arith.constant 0 : i32
    %c0_i32_0 = arith.constant 0 : i32
    %c0_i32_1 = arith.constant 0 : i32
    return %c0_i32, %c0_i32_0 : i32, i32
  }
  func.func @transform_3(%arg0: i32) -> (i32, i32) {
    %c0_i32 = arith.constant 0 : i32
    %c0_i32_0 = arith.constant 0 : i32
    %c0_i32_1 = arith.constant 0 : i32
    return %c0_i32, %c0_i32_0 : i32, i32
  }
  func.func @transform_4(%arg0: i32) -> (i32, i32) {
    %c0_i32 = arith.constant 0 : i32
    %c0_i32_0 = arith.constant 0 : i32
    %c0_i32_1 = arith.constant 0 : i32
    return %c0_i32, %c0_i32_0 : i32, i32
  }
  func.func @transform_5(%arg0: i32) -> (i32, i32) {
    %c0_i32 = arith.constant 0 : i32
    %c0_i32_0 = arith.constant 0 : i32
    %c0_i32_1 = arith.constant 0 : i32
    return %c0_i32, %c0_i32_0 : i32, i32
  }
  func.func @transform_6(%arg0: i32) -> (i32, i32) {
    %c0_i32 = arith.constant 0 : i32
    %c0_i32_0 = arith.constant 0 : i32
    %c0_i32_1 = arith.constant 0 : i32
    return %c0_i32, %c0_i32_0 : i32, i32
  }
  func.func @transform_7(%arg0: i32) -> (i32, i32) {
    %c0_i32 = arith.constant 0 : i32
    %c0_i32_0 = arith.constant 0 : i32
    return %arg0, %c0_i32 : i32, i32
  }
}

</mosaic_0001>

<llo_original>
// kernel: polymod_forward.1
$region0: #{polymod_forward.1}
  #allocation0 [shape = 'u32[]', space=smem, size = 0x4, offset = 0x4, fixed_abs, tag = 'smem constant byte address 0x4 - core index']
  #allocation1 [shape = 'u32[144,128]{1,0:T(1,128)}', space=vmem, size = 0x12000, scoped, tag = 'internal scratch']
  %s0 = inlined_call_operand.vmem [shape: f32[8,180], index: 0, kind: input, shape index: {}]
  %s1 = inlined_call_operand.vmem [shape: bf16[180,128], index: 1, kind: input, shape index: {}]
  %s2 = inlined_call_operand.vmem [shape: bf16[1,128], index: 2, kind: input, shape index: {}]
  %s3 = inlined_call_operand.vmem [shape: bf16[128,128], index: 3, kind: input, shape index: {}]
  %s4 = inlined_call_operand.vmem [shape: bf16[1,128], index: 4, kind: input, shape index: {}]
  %s5 = inlined_call_operand.vmem [shape: bf16[128,2], index: 5, kind: input, shape index: {}]
  %s6 = inlined_call_operand.vmem [shape: f32[1,2], index: 6, kind: input, shape index: {}]
  %s7 = inlined_call_operand.vmem [shape: f32[8,2], index: 7, kind: output, shape index: {}]
  %s8 = sld [smem:[#allocation0]]
  $region38: #{polymod_forward.1} parent=0
    _
  %s10 = ssub.s32 1, %s8
  %s11 = scalar_select 0, %s10, %s8
  // Predicated region
  $region2: #{polymod_forward.1} parent=0 // pred_check
    _
  $region3: #{polymod_forward.1} parent=0 // pred_check_branch
    %13 = sbr.rel (0) target = $region5
  $region4: #{polymod_forward.1} parent=0 // pred_region
    _
  $region5: #{polymod_forward.1} parent=0 // pred_fallthru
    _
  // Predicated region
  $region6: #{polymod_forward.1} parent=0 // pred_check
    _
  $region7: #{polymod_forward.1} parent=0 // pred_check_branch
    %15 = sbr.rel (0) target = $region9
  $region8: #{polymod_forward.1} parent=0 // pred_region
    _
  $region9: #{polymod_forward.1} parent=0 // pred_fallthru
    _
  // Predicated region
  $region10: #{polymod_forward.1} parent=0 // pred_check
    _
  $region11: #{polymod_forward.1} parent=0 // pred_check_branch
    %17 = sbr.rel (0) target = $region13
  $region12: #{polymod_forward.1} parent=0 // pred_region
    _
  $region13: #{polymod_forward.1} parent=0 // pred_fallthru
    _
  // Predicated region
  $region14: #{polymod_forward.1} parent=0 // pred_check
    _
  $region15: #{polymod_forward.1} parent=0 // pred_check_branch
    %19 = sbr.rel (0) target = $region17
  $region16: #{polymod_forward.1} parent=0 // pred_region
    _
  $region17: #{polymod_forward.1} parent=0 // pred_fallthru
    _
  // Predicated region
  $region18: #{polymod_forward.1} parent=0 // pred_check
    _
  $region19: #{polymod_forward.1} parent=0 // pred_check_branch
    %21 = sbr.rel (0) target = $region21
  $region20: #{polymod_forward.1} parent=0 // pred_region
    _
  $region21: #{polymod_forward.1} parent=0 // pred_fallthru
    _
  // Predicated region
  $region22: #{polymod_forward.1} parent=0 // pred_check
    _
  $region23: #{polymod_forward.1} parent=0 // pred_check_branch
    %23 = sbr.rel (0) target = $region25
  $region24: #{polymod_forward.1} parent=0 // pred_region
    _
  $region25: #{polymod_forward.1} parent=0 // pred_fallthru
    _
  // Predicated region
  $region26: #{polymod_forward.1} parent=0 // pred_check
    _
  $region27: #{polymod_forward.1} parent=0 // pred_check_branch
    %25 = sbr.rel (0) target = $region29
  $region28: #{polymod_forward.1} parent=0 // pred_region
    _
  $region29: #{polymod_forward.1} parent=0 // pred_fallthru
    _
  %v27 = vld [vmem:[%s0] sm:$0xff]
  %v28 = vld [vmem:[%s0 + $0x8] sm:$0xff]
  %v29 = vpack.c.bf16 %v27, %v27
  %v30 = vpack.c.bf16 %v28, %v28
  %v31 = vld [vmem:[%s1] sm:$0xf]
  %v32 = vld [vmem:[%s1 + $0x4] sm:$0xf]
  %v33 = vld [vmem:[%s1 + $0x8] sm:$0xf]
  %v34 = vld [vmem:[%s1 + $0xc] sm:$0xf]
  %v35 = vld [vmem:[%s1 + $0x10] sm:$0xf]
  %v36 = vld [vmem:[%s1 + $0x14] sm:$0xf]
  %v37 = vld [vmem:[%s1 + $0x18] sm:$0xf]
  %v38 = vld [vmem:[%s1 + $0x1c] sm:$0xf]
  %v39 = vld [vmem:[%s1 + $0x20] sm:$0xf]
  %v40 = vld [vmem:[%s1 + $0x24] sm:$0xf]
  %v41 = vld [vmem:[%s1 + $0x28] sm:$0xf]
  %v42 = vld [vmem:[%s1 + $0x2c] sm:$0xf]
  %v43 = vld [vmem:[%s1 + $0x30] sm:$0xf]
  %v44 = vld [vmem:[%s1 + $0x34] sm:$0xf]
  %v45 = vld [vmem:[%s1 + $0x38] sm:$0xf]
  %v46 = vld [vmem:[%s1 + $0x3c] sm:$0xf]
  %v47 = vld [vmem:[%s1 + $0x40] sm:$0xf]
  %v48 = vld [vmem:[%s1 + $0x44] sm:$0xf]
  %v49 = vld [vmem:[%s1 + $0x48] sm:$0xf]
  %v50 = vld [vmem:[%s1 + $0x4c] sm:$0xf]
  %v51 = vld [vmem:[%s1 + $0x50] sm:$0xf]
  %v52 = vld [vmem:[%s1 + $0x54] sm:$0xf]
  %v53 = vld [vmem:[%s1 + $0x58] sm:$0x3]
  %v77 = vunpack.c.l.b16 %v31
  %v78 = vunpack.c.l.b16 %v32
  %v79 = vunpack.c.l.b16 %v33
  %v80 = vunpack.c.l.b16 %v34
  %v81 = vunpack.c.l.b16 %v35
  %v82 = vunpack.c.l.b16 %v36
  %v83 = vunpack.c.l.b16 %v37
  %v84 = vunpack.c.l.b16 %v38
  %v85 = vunpack.c.l.b16 %v39
  %v86 = vunpack.c.l.b16 %v40
  %v87 = vunpack.c.l.b16 %v41
  %v88 = vunpack.c.l.b16 %v42
  %v89 = vunpack.c.l.b16 %v43
  %v90 = vunpack.c.l.b16 %v44
  %v91 = vunpack.c.l.b16 %v45
  %v92 = vunpack.c.l.b16 %v46
  %v93 = vunpack.c.l.b16 %v47
  %v94 = vunpack.c.l.b16 %v48
  %v95 = vunpack.c.l.b16 %v49
  %v96 = vunpack.c.l.b16 %v50
  %v97 = vunpack.c.l.b16 %v51
  %v98 = vunpack.c.l.b16 %v52
  %v99 = vunpack.c.l.b16 %v53
  %v100 = vpack.c.b16 %v78, %v77
  %v101 = vpack.c.b16 %v80, %v79
  %v102 = vpack.c.b16 %v82, %v81
  %v103 = vpack.c.b16 %v84, %v83
  %v104 = vpack.c.b16 %v86, %v85
  %v105 = vpack.c.b16 %v88, %v87
  %v106 = vpack.c.b16 %v90, %v89
  %v107 = vpack.c.b16 %v92, %v91
  %v108 = vpack.c.b16 %v94, %v93
  %v109 = vpack.c.b16 %v96, %v95
  %v110 = vpack.c.b16 %v98, %v97
  %v111 = vpack.c.b16 %v99, %v99
  %vm123 = vcmask 424960
  %v125 = vsel %vm123, %v30, 0
  %vm127 = vcmask 1041408
  %v129 = vsel %vm127, %v111, 0
  %131 = vmatprep.subr.bf16.mxu0 0
  %132 = vmatpush1.bf16.msra.mxu0 %v107
  %133 = vmatprep.subr.bf16.mxu0 0
  %134 = vmatpush1.bf16.msra.mxu0 %v106
  %135 = vmatprep.subr.bf16.mxu0 0
  %136 = vmatpush1.bf16.msra.mxu0 %v105
  %137 = vmatprep.subr.bf16.mxu0 0
  %138 = vmatpush1.bf16.msra.mxu0 %v104
  %139 = vmatprep.subr.bf16.mxu0 0
  %140 = vmatpush1.bf16.msra.mxu0 %v103
  %141 = vmatprep.subr.bf16.mxu0 0
  %142 = vmatpush1.bf16.msra.mxu0 %v102
  %143 = vmatprep.subr.bf16.mxu0 0
  %144 = vmatpush1.bf16.msra.mxu0 %v101
  %145 = vmatprep.subr.bf16.mxu0 0
  %146 = vmatpush1.bf16.msra.mxu0 %v100
  %147 = vmatprep.subr.bf16.mxu0 0
  %148 = vmatpush2.bf16.msra.mxu0 0
  %149 = vmatprep.subr.bf16.mxu0 0
  %150 = vmatpush2.bf16.msra.mxu0 0
  %151 = vmatprep.subr.bf16.mxu0 0
  %152 = vmatpush2.bf16.msra.mxu0 0
  %153 = vmatprep.subr.bf16.mxu0 0
  %154 = vmatpush2.bf16.msra.mxu0 0
  %155 = vmatprep.subr.bf16.mxu0 0
  %156 = vmatpush2.bf16.msra.mxu0 %v129
  %157 = vmatprep.subr.bf16.mxu0 0
  %158 = vmatpush2.bf16.msra.mxu0 %v110
  %159 = vmatprep.subr.bf16.mxu0 0
  %160 = vmatpush2.bf16.msra.mxu0 %v109
  %161 = vmatprep.subr.bf16.mxu0 0
  %162 = vmatpush2.bf16.msra.mxu0 %v108
  %163 = vmatprep.mubr.bf16.mxu0 %v125
  %164 = vmatmul.mubr.bf16.gmra.mxu0 %v29
  %v165 = vpop.f32.mrf.mxu0
  %v166 = vadd.f32 0.0, %v165
  %v167 = vpop.f32.mrf.mxu0
  %v168 = vpop.f32.mrf.mxu0
  %v169 = vpop.f32.mrf.mxu0
  %170 = vdwg.mxu0
  %v171 = vpack.c.bf16 %v166, %v166
  %v172 = vld [vmem:[%s2] sm:$0x1]
  %v174 = vpack.i.b16 %v172, %v172
  %v176 = vlaneseq
  %v177 = vshrl.u32 %v176, 7
  %v178 = vsub.s32 0, %v177
  %v179 = vrot.slane %v174, %v178
  %v180 = vadd.bf16 %v171, %v179
  %v181 = vmax.bf16 %v180, 0
  %v182 = vld [vmem:[%s3] sm:$0xf]
  %v183 = vld [vmem:[%s3 + $0x4] sm:$0xf]
  %v184 = vld [vmem:[%s3 + $0x8] sm:$0xf]
  %v185 = vld [vmem:[%s3 + $0xc] sm:$0xf]
  %v186 = vld [vmem:[%s3 + $0x10] sm:$0xf]
  %v187 = vld [vmem:[%s3 + $0x14] sm:$0xf]
  %v188 = vld [vmem:[%s3 + $0x18] sm:$0xf]
  %v189 = vld [vmem:[%s3 + $0x1c] sm:$0xf]
  %v190 = vld [vmem:[%s3 + $0x20] sm:$0xf]
  %v191 = vld [vmem:[%s3 + $0x24] sm:$0xf]
  %v192 = vld [vmem:[%s3 + $0x28] sm:$0xf]
  %v193 = vld [vmem:[%s3 + $0x2c] sm:$0xf]
  %v194 = vld [vmem:[%s3 + $0x30] sm:$0xf]
  %v195 = vld [vmem:[%s3 + $0x34] sm:$0xf]
  %v196 = vld [vmem:[%s3 + $0x38] sm:$0xf]
  %v197 = vld [vmem:[%s3 + $0x3c] sm:$0xf]
  %v214 = vunpack.c.l.b16 %v182
  %v215 = vunpack.c.l.b16 %v183
  %v216 = vunpack.c.l.b16 %v184
  %v217 = vunpack.c.l.b16 %v185
  %v218 = vunpack.c.l.b16 %v186
  %v219 = vunpack.c.l.b16 %v187
  %v220 = vunpack.c.l.b16 %v188
  %v221 = vunpack.c.l.b16 %v189
  %v222 = vunpack.c.l.b16 %v190
  %v223 = vunpack.c.l.b16 %v191
  %v224 = vunpack.c.l.b16 %v192
  %v225 = vunpack.c.l.b16 %v193
  %v226 = vunpack.c.l.b16 %v194
  %v227 = vunpack.c.l.b16 %v195
  %v228 = vunpack.c.l.b16 %v196
  %v229 = vunpack.c.l.b16 %v197
  %v230 = vpack.c.b16 %v215, %v214
  %v231 = vpack.c.b16 %v217, %v216
  %v232 = vpack.c.b16 %v219, %v218
  %v233 = vpack.c.b16 %v221, %v220
  %v234 = vpack.c.b16 %v223, %v222
  %v235 = vpack.c.b16 %v225, %v224
  %v236 = vpack.c.b16 %v227, %v226
  %v237 = vpack.c.b16 %v229, %v228
  %246 = vmatprep.subr.bf16.mxu0 0
  %247 = vmatpush1.bf16.msra.mxu0 %v237
  %248 = vmatprep.subr.bf16.mxu0 0
  %249 = vmatpush1.bf16.msra.mxu0 %v236
  %250 = vmatprep.subr.bf16.mxu0 0
  %251 = vmatpush1.bf16.msra.mxu0 %v235
  %252 = vmatprep.subr.bf16.mxu0 0
  %253 = vmatpush1.bf16.msra.mxu0 %v234
  %254 = vmatprep.subr.bf16.mxu0 0
  %255 = vmatpush1.bf16.msra.mxu0 %v233
  %256 = vmatprep.subr.bf16.mxu0 0
  %257 = vmatpush1.bf16.msra.mxu0 %v232
  %258 = vmatprep.subr.bf16.mxu0 0
  %259 = vmatpush1.bf16.msra.mxu0 %v231
  %260 = vmatprep.subr.bf16.mxu0 0
  %261 = vmatpush1.bf16.msra.mxu0 %v230
  %262 = vmatprep.subr.bf16.mxu0 0
  %263 = vmatpush2.bf16.msra.mxu0 0
  %264 = vmatprep.subr.bf16.mxu0 0
  %265 = vmatpush2.bf16.msra.mxu0 0
  %266 = vmatprep.subr.bf16.mxu0 0
  %267 = vmatpush2.bf16.msra.mxu0 0
  %268 = vmatprep.subr.bf16.mxu0 0
  %269 = vmatpush2.bf16.msra.mxu0 0
  %270 = vmatprep.subr.bf16.mxu0 0
  %271 = vmatpush2.bf16.msra.mxu0 0
  %272 = vmatprep.subr.bf16.mxu0 0
  %273 = vmatpush2.bf16.msra.mxu0 0
  %274 = vmatprep.subr.bf16.mxu0 0
  %275 = vmatpush2.bf16.msra.mxu0 0
  %276 = vmatprep.subr.bf16.mxu0 0
  %277 = vmatpush2.bf16.msra.mxu0 0
  %278 = vmatprep.mubr.bf16.mxu0 0
  %279 = vmatmul.mubr.bf16.gmra.mxu0 %v181
  %v280 = vpop.f32.mrf.mxu0
  %v281 = vadd.f32 0.0, %v280
  %v282 = vpop.f32.mrf.mxu0
  %v283 = vpop.f32.mrf.mxu0
  %v284 = vpop.f32.mrf.mxu0
  %285 = vdwg.mxu0
  %v286 = vpack.c.bf16 %v281, %v281
  %v287 = vld [vmem:[%s4] sm:$0x1]
  %v289 = vpack.i.b16 %v287, %v287
  %v291 = vlaneseq
  %v292 = vshrl.u32 %v291, 7
  %v293 = vsub.s32 0, %v292
  %v294 = vrot.slane %v289, %v293
  %v295 = vadd.bf16 %v286, %v294
  %v296 = vmax.bf16 %v295, 0
  %v297 = vld [vmem:[%s5] sm:$0xf]
  %v298 = vld [vmem:[%s5 + $0x4] sm:$0xf]
  %v299 = vld [vmem:[%s5 + $0x8] sm:$0xf]
  %v300 = vld [vmem:[%s5 + $0xc] sm:$0xf]
  %v301 = vld [vmem:[%s5 + $0x10] sm:$0xf]
  %v302 = vld [vmem:[%s5 + $0x14] sm:$0xf]
  %v303 = vld [vmem:[%s5 + $0x18] sm:$0xf]
  %v304 = vld [vmem:[%s5 + $0x1c] sm:$0xf]
  %v305 = vld [vmem:[%s5 + $0x20] sm:$0xf]
  %v306 = vld [vmem:[%s5 + $0x24] sm:$0xf]
  %v307 = vld [vmem:[%s5 + $0x28] sm:$0xf]
  %v308 = vld [vmem:[%s5 + $0x2c] sm:$0xf]
  %v309 = vld [vmem:[%s5 + $0x30] sm:$0xf]
  %v310 = vld [vmem:[%s5 + $0x34] sm:$0xf]
  %v311 = vld [vmem:[%s5 + $0x38] sm:$0xf]
  %v312 = vld [vmem:[%s5 + $0x3c] sm:$0xf]
  %v313 = vld [vmem:[%s6] sm:$0x1]
  %v315 = vlaneseq
  %v316 = vshrl.u32 %v315, 7
  %v317 = vsub.s32 0, %v316
  %v318 = vrot.slane %v313, %v317
  %v336 = vunpack.c.l.b16 %v297
  %v337 = vunpack.c.l.b16 %v298
  %v338 = vunpack.c.l.b16 %v299
  %v339 = vunpack.c.l.b16 %v300
  %v340 = vunpack.c.l.b16 %v301
  %v341 = vunpack.c.l.b16 %v302
  %v342 = vunpack.c.l.b16 %v303
  %v343 = vunpack.c.l.b16 %v304
  %v344 = vunpack.c.l.b16 %v305
  %v345 = vunpack.c.l.b16 %v306
  %v346 = vunpack.c.l.b16 %v307
  %v347 = vunpack.c.l.b16 %v308
  %v348 = vunpack.c.l.b16 %v309
  %v349 = vunpack.c.l.b16 %v310
  %v350 = vunpack.c.l.b16 %v311
  %v351 = vunpack.c.l.b16 %v312
  %v352 = vpack.c.b16 %v337, %v336
  %v353 = vpack.c.b16 %v339, %v338
  %v354 = vpack.c.b16 %v341, %v340
  %v355 = vpack.c.b16 %v343, %v342
  %v356 = vpack.c.b16 %v345, %v344
  %v357 = vpack.c.b16 %v347, %v346
  %v358 = vpack.c.b16 %v349, %v348
  %v359 = vpack.c.b16 %v351, %v350
  %368 = vmatprep.subr.bf16.mxu0 0
  %369 = vmatpush1.bf16.msra.mxu0 %v359
  %370 = vmatprep.subr.bf16.mxu0 0
  %371 = vmatpush1.bf16.msra.mxu0 %v358
  %372 = vmatprep.subr.bf16.mxu0 0
  %373 = vmatpush1.bf16.msra.mxu0 %v357
  %374 = vmatprep.subr.bf16.mxu0 0
  %375 = vmatpush1.bf16.msra.mxu0 %v356
  %376 = vmatprep.subr.bf16.mxu0 0
  %377 = vmatpush1.bf16.msra.mxu0 %v355
  %378 = vmatprep.subr.bf16.mxu0 0
  %379 = vmatpush1.bf16.msra.mxu0 %v354
  %380 = vmatprep.subr.bf16.mxu0 0
  %381 = vmatpush1.bf16.msra.mxu0 %v353
  %382 = vmatprep.subr.bf16.mxu0 0
  %383 = vmatpush1.bf16.msra.mxu0 %v352
  %384 = vmatprep.subr.bf16.mxu0 0
  %385 = vmatpush2.bf16.msra.mxu0 0
  %386 = vmatprep.subr.bf16.mxu0 0
  %387 = vmatpush2.bf16.msra.mxu0 0
  %388 = vmatprep.subr.bf16.mxu0 0
  %389 = vmatpush2.bf16.msra.mxu0 0
  %390 = vmatprep.subr.bf16.mxu0 0
  %391 = vmatpush2.bf16.msra.mxu0 0
  %392 = vmatprep.subr.bf16.mxu0 0
  %393 = vmatpush2.bf16.msra.mxu0 0
  %394 = vmatprep.subr.bf16.mxu0 0
  %395 = vmatpush2.bf16.msra.mxu0 0
  %396 = vmatprep.subr.bf16.mxu0 0
  %397 = vmatpush2.bf16.msra.mxu0 0
  %398 = vmatprep.subr.bf16.mxu0 0
  %399 = vmatpush2.bf16.msra.mxu0 0
  %400 = vmatprep.mubr.bf16.mxu0 0
  %401 = vmatmul.mubr.bf16.gmra.mxu0 %v296
  %v402 = vpop.f32.mrf.mxu0
  %v403 = vadd.f32 %v318, %v402
  %v404 = vpop.f32.mrf.mxu0
  %v405 = vpop.f32.mrf.mxu0
  %v406 = vpop.f32.mrf.mxu0
  %407 = vdwg.mxu0
  %vm408 = vcmask 15360
  %409 = vst.msk [vmem:[%s7] sm:$0xff] %vm408, %v403
  // Predicated region
  $region30: #{polymod_forward.1} parent=0 // pred_check
    _
  $region31: #{polymod_forward.1} parent=0 // pred_check_branch
    %411 = sbr.rel (0) target = $region33
  $region32: #{polymod_forward.1} parent=0 // pred_region
    _
  $region33: #{polymod_forward.1} parent=0 // pred_fallthru
    _
  // Predicated region
  $region34: #{polymod_forward.1} parent=0 // pred_check
    _
  $region35: #{polymod_forward.1} parent=0 // pred_check_branch
    %413 = sbr.rel (0) target = $region37
  $region36: #{polymod_forward.1} parent=0 // pred_region
    _
  $region37: #{polymod_forward.1} parent=0 // pred_fallthru
    _

</llo_original>
